<compile_context>
chip_gen: v6e
topology: v6e:2x2x1
jax: 0.10.0
libtpu: 0.0.40
codegen_flags: <defaults>
</compile_context>

<pallas_src>
import jax
import jax.numpy as jnp
from jax.experimental import pallas as pl
from jax.experimental.pallas import tpu as pltpu


def _round_up(x, m):
    return (x + m - 1) // m * m


def _patch_embed_kernel(x_ref, w_ref, b_ref, o_ref):
    # x_ref: (TM, Kp)  bf16 flattened patches (tile of M)
    # w_ref: (Kp, Ep)  bf16 projection weight (VMEM-resident, constant index_map)
    # b_ref: (1, Ep)   f32 bias               (VMEM-resident, constant index_map)
    # o_ref: (TM, Ep)  output tile
    acc = jnp.dot(x_ref[...], w_ref[...], preferred_element_type=jnp.float32)
    o_ref[...] = (acc + b_ref[...]).astype(o_ref.dtype)


def _vmem_budget_bytes():
    """(per-tile byte budget, vmem_limit cap) sized per TPU generation."""
    try:
        cap = pltpu.get_tpu_info().vmem_capacity_bytes
    except Exception:
        cap = 64 << 20                       # be conservative (v7x per-TC size)
    if cap >= (100 << 20):                   # v5e / v6e: 128 MiB physical
        return 64 << 20, 96 << 20
    return 24 << 20, 48 << 20                # v7x: 64 MiB per TensorCore


def _pick_tile_m(M, Kp, Ep, *, in_bytes, out_bytes, budget_bytes):
    """Pick (TM, Mp): TM rows per grid step, Mp = padded M (Mp % TM == 0)."""
    # Resident for the whole grid: weight + bias (pipeline double-buffers them
    # even though their index_map is constant -> fetched only once).
    resident = 2 * (Kp * Ep * in_bytes + Ep * 4)
    # Per-row: double-buffered input tile + double-buffered output tile
    # + in-kernel f32 matmul result / bias-add temporary.
    per_row = 2 * Kp * in_bytes + 2 * Ep * out_bytes + Ep * 4
    budget_rows = max(16, (budget_bytes - resident) // per_row)
    hi = int(min(budget_rows, 4096))

    if M <= 16:                              # tiny problem: single full block
        tm = _round_up(M, 8)
        return tm, tm

    # Keep at least 2 grid steps so both v7x TensorCores get work.
    hi = min(hi, max(16, M // 2))

    # Prefer a TM that divides M exactly (no row padding, no output slice copy),
    # trying MXU-friendly alignments first (256 on v6e/v7x, then finer).
    for align in (256, 128, 64, 32, 16, 8):
        start = (hi // align) * align
        for tm in range(start, align - 1, -align):
            if M % tm == 0:
                return tm, M

    # Fall back: power-of-two TM with row padding.
    tm = max(16, 1 << (max(hi, 16).bit_length() - 1))
    return tm, _round_up(M, tm)


def patch_embedding(x, weight, bias, patch_size, out_dtype=jnp.bfloat16):
    """x: (B, C, H, W); weight: (E, C, ph, pw); bias: (E,).  Returns (B, N, E).

    Same math as nn.Conv2d(C, E, kernel_size=patch_size, stride=patch_size)
    followed by flatten(2).transpose(1, 2).  Inputs are computed in bf16 with
    f32 MXU accumulation; output dtype defaults to bf16 (pass jnp.float32 for
    exact Conv2d output dtype).
    """
    B, C, H, W = x.shape
    E = weight.shape[0]
    ph, pw = patch_size
    Hp, Wp = H // ph, W // pw
    N = Hp * Wp
    K = C * ph * pw
    M = B * N

    in_bytes = 2
    out_bytes = jnp.dtype(out_dtype).itemsize

    # --- glue: cast to bf16 FIRST (half the bytes for the rearrangement), then
    # extract non-overlapping patches ordered (c, kh, kw) to match the PyTorch
    # conv weight memory layout (E, C, ph, pw).  With allow_input_fusion below,
    # XLA may fuse this producer chain directly into the kernel's input DMA.
    xb = x.astype(jnp.bfloat16)
    xp = xb.reshape(B, C, Hp, ph, Wp, pw)
    xp = jnp.transpose(xp, (0, 2, 4, 1, 3, 5)).reshape(M, K)

    w2d = weight.reshape(E, K).T                         # (K, E)

    # --- lane-dense padding: K and E up to multiples of 128 (zero rows/cols,
    # mathematically a no-op for the matmul).
    Kp = _round_up(K, 128)
    Ep = _round_up(E, 128)
    if Kp != K:
        xp = jnp.pad(xp, ((0, 0), (0, Kp - K)))
    if Kp != K or Ep != E:
        w2d = jnp.pad(w2d, ((0, Kp - K), (0, Ep - E)))
    b2d = bias
    if Ep != E:
        b2d = jnp.pad(b2d, (0, Ep - E))
    b2d = b2d.reshape(1, Ep).astype(jnp.float32)
    w2d = w2d.astype(jnp.bfloat16)

    # --- generation-aware tile of the M axis (prefer a divisor of M).
    budget_bytes, limit_cap = _vmem_budget_bytes()
    TM, Mp = _pick_tile_m(M, Kp, Ep, in_bytes=in_bytes, out_bytes=out_bytes,
                          budget_bytes=budget_bytes)
    if Mp != M:
        xp = jnp.pad(xp, ((0, Mp - M), (0, 0)))

    vmem_need = (2 * TM * Kp * in_bytes                  # input tile, double-buffered
                 + 2 * TM * Ep * out_bytes               # output tile, double-buffered
                 + TM * Ep * 4                           # f32 matmul result / temp
                 + 2 * (Kp * Ep * in_bytes + Ep * 4))    # weight + bias buffers
    vmem_limit = int(min(max(vmem_need + (8 << 20), 16 << 20), limit_cap))

    cost = pl.CostEstimate(
        flops=2 * M * Kp * Ep,
        transcendentals=0,
        bytes_accessed=int(Mp * Kp * in_bytes + Kp * Ep * in_bytes + Ep * 4
                           + Mp * Ep * out_bytes),
    )

    out = pl.pallas_call(
        _patch_embed_kernel,
        out_shape=jax.ShapeDtypeStruct((Mp, Ep), out_dtype),
        grid=(Mp // TM,),
        in_specs=[
            pl.BlockSpec((TM, Kp), lambda i: (i, 0)),    # patch tile (pipelined)
            pl.BlockSpec((Kp, Ep), lambda i: (0, 0)),    # weight (fetched once)
            pl.BlockSpec((1, Ep), lambda i: (0, 0)),     # bias   (fetched once)
        ],
        out_specs=pl.BlockSpec((TM, Ep), lambda i: (i, 0)),
        compiler_params=pltpu.CompilerParams(
            dimension_semantics=("parallel",),
            vmem_limit_bytes=vmem_limit,
            allow_input_fusion=[True, False, False],
        ),
        cost_estimate=cost,
    )(xp, w2d, b2d)

    if Mp != M or Ep != E:
        out = out[:M, :E]
    return out.reshape(B, N, E)


if __name__ == "__main__":
    # Small shapes consistent with the module: patch_size=(16, 8).
    patch_size = (16, 8)
    B, C, H, W = 2, 4, 32, 16          # img_size = (32, 16) -> 2x2 = 4 patches
    E = 32                             # embed_dim

    key = jax.random.PRNGKey(0)
    kx, kw, kb = jax.random.split(key, 3)

    x = jax.random.normal(kx, (B, C, H, W), dtype=jnp.float32)
    # Deterministic synthetic parameters (conv weight layout: (E, C, ph, pw)).
    weight = jax.random.normal(kw, (E, C, patch_size[0], patch_size[1]),
                               dtype=jnp.float32) * 0.02
    bias = jax.random.normal(kb, (E,), dtype=jnp.float32) * 0.02

    # jit the wrapper so the patch transpose / pad producers live in the same
    # XLA computation as the pallas_call (required for allow_input_fusion).
    embed = jax.jit(lambda xx, ww, bb: patch_embedding(xx, ww, bb, patch_size))
    out = embed(x, weight, bias)
    jax.block_until_ready(out)

    # Reference: same conv-as-matmul in plain JAX with the same bf16 input cast
    # and f32 accumulation; the kernel output is bf16, so compare in f32 with a
    # bf16-sized tolerance.
    Hp, Wp = H // patch_size[0], W // patch_size[1]
    xp_ref = jnp.transpose(
        x.reshape(B, C, Hp, patch_size[0], Wp, patch_size[1]),
        (0, 2, 4, 1, 3, 5),
    ).reshape(B, Hp * Wp, -1)
    xp_bf = xp_ref.astype(jnp.bfloat16).astype(jnp.float32)
    w_bf = weight.reshape(E, -1).astype(jnp.bfloat16).astype(jnp.float32)
    ref = jnp.einsum("bnk,ek->bne", xp_bf, w_bf) + bias

    assert out.shape == (B, Hp * Wp, E)
    assert out.dtype == jnp.bfloat16
    err = float(jnp.max(jnp.abs(out.astype(jnp.float32) - ref)))
    assert err < 3e-2, err

    print("KERNEL_OK")
</pallas_src>

<mosaic_0001>
module attributes {stable_mosaic.version = 11 : i64} {
  func.func @_patch_embed_kernel(%arg0: i32, %arg1: memref<8x512xbf16, #tpu.memory_space<vmem>>, %arg2: memref<512x128xbf16, #tpu.memory_space<vmem>>, %arg3: memref<1x128xf32, #tpu.memory_space<vmem>>, %arg4: memref<8x128xbf16, #tpu.memory_space<vmem>>) attributes {dimension_semantics = [#tpu.dimension_semantics<parallel>], iteration_bounds = array<i64: 1>, scalar_prefetch = 0 : i64, scratch_operands = 0 : i64, tpu.core_type = #tpu.core_type<tc>, window_params = [{transform_indices = @transform_0, window_bounds = array<i64: 8, 512>}, {pipeline_mode = #tpu.pipeline_mode<synchronous>, transform_indices = @transform_1, window_bounds = array<i64: 512, 128>}, {pipeline_mode = #tpu.pipeline_mode<synchronous>, transform_indices = @transform_2, window_bounds = array<i64: 1, 128>}, {transform_indices = @transform_3, window_bounds = array<i64: 8, 128>}]} {
    %c0 = arith.constant 0 : index
    %c0_0 = arith.constant 0 : index
    %0 = vector.load %arg1[%c0, %c0_0] : memref<8x512xbf16, #tpu.memory_space<vmem>>, vector<8x512xbf16>
    %c0_1 = arith.constant 0 : index
    %c0_2 = arith.constant 0 : index
    %1 = vector.load %arg2[%c0_1, %c0_2] : memref<512x128xbf16, #tpu.memory_space<vmem>>, vector<512x128xbf16>
    %cst = arith.constant dense<0.000000e+00> : vector<8x128xf32>
    %2 = tpu.matmul %0, %1, %cst {dimension_numbers = #tpu.dot_dimension_numbers<[1], [0], [0], [1], [0, 0, 1, 1], [], []>} : vector<8x512xbf16>, vector<512x128xbf16>, vector<8x128xf32> -> vector<8x128xf32>
    %c0_3 = arith.constant 0 : index
    %c0_4 = arith.constant 0 : index
    %3 = vector.load %arg3[%c0_3, %c0_4] : memref<1x128xf32, #tpu.memory_space<vmem>>, vector<1x128xf32>
    %4 = vector.broadcast %3 : vector<1x128xf32> to vector<8x128xf32>
    %5 = arith.addf %2, %4 : vector<8x128xf32>
    %6 = arith.truncf %5 : vector<8x128xf32> to vector<8x128xbf16>
    %c0_5 = arith.constant 0 : index
    %c0_6 = arith.constant 0 : index
    %7 = vector.load %arg4[%c0_5, %c0_6] : memref<8x128xbf16, #tpu.memory_space<vmem>>, vector<8x128xbf16>
    tpu.vector_store %arg4[%c0_5, %c0_6], %6 {strides = array<i32>} : memref<8x128xbf16, #tpu.memory_space<vmem>>, vector<8x128xbf16>,
    return
  }
  func.func @transform_0(%arg0: i32) -> (i32, i32) {
    %c0_i32 = arith.constant 0 : i32
    %c0_i32_0 = arith.constant 0 : i32
    return %arg0, %c0_i32 : i32, i32
  }
  func.func @transform_1(%arg0: i32) -> (i32, i32) {
    %c0_i32 = arith.constant 0 : i32
    %c0_i32_0 = arith.constant 0 : i32
    %c0_i32_1 = arith.constant 0 : i32
    return %c0_i32, %c0_i32_0 : i32, i32
  }
  func.func @transform_2(%arg0: i32) -> (i32, i32) {
    %c0_i32 = arith.constant 0 : i32
    %c0_i32_0 = arith.constant 0 : i32
    %c0_i32_1 = arith.constant 0 : i32
    return %c0_i32, %c0_i32_0 : i32, i32
  }
  func.func @transform_3(%arg0: i32) -> (i32, i32) {
    %c0_i32 = arith.constant 0 : i32
    %c0_i32_0 = arith.constant 0 : i32
    return %arg0, %c0_i32 : i32, i32
  }
}

</mosaic_0001>

<llo_original>
// kernel: _lambda_.1
$region0: #{_lambda_.1}
  #allocation0 [shape = 'u32[]', space=smem, size = 0x4, offset = 0x4, fixed_abs, tag = 'smem constant byte address 0x4 - core index']
  #allocation1 [shape = 'u32[144,128]{1,0:T(1,128)}', space=vmem, size = 0x12000, scoped, tag = 'internal scratch']
  %s0 = inlined_call_operand.vmem [shape: bf16[8,512], index: 0, kind: input, shape index: {}]
  %s1 = inlined_call_operand.vmem [shape: bf16[512,128], index: 1, kind: input, shape index: {}]
  %s2 = inlined_call_operand.vmem [shape: f32[1,128], index: 2, kind: input, shape index: {}]
  %s3 = inlined_call_operand.hbm [shape: bf16[8,128], index: 3, kind: output, shape index: {}]
  %s4 = sld [smem:[#allocation0]]
  $region22: #{_lambda_.1} parent=0
    _
  %s6 = ssub.s32 1, %s4
  %s7 = scalar_select 0, %s6, %s4
  $region1: #{_lambda_.1} parent=0
    #allocation2 [shape = 'u8[2048]{0}', space=vmem, size = 0x800, scoped, tag = 'output window, operand 0, single buffered']
    #allocation3 [shape = 's32[1]{0}', space=sflag, size = 0x4, scoped, tag = 'scoped memory for _lambda_.1']
    %8 = vsyncpa [#allocation3], 0
    // Predicated region
    $region2: #{_lambda_.1} parent=1 // pred_check
      _
    $region3: #{_lambda_.1} parent=1 // pred_check_branch
      %10 = sbr.rel (0) target = $region5
    $region4: #{_lambda_.1} parent=1 // pred_region
      _
    $region5: #{_lambda_.1} parent=1 // pred_fallthru
      _
    // Predicated region
    $region6: #{_lambda_.1} parent=1 // pred_check
      _
    $region7: #{_lambda_.1} parent=1 // pred_check_branch
      %12 = sbr.rel (0) target = $region9
    $region8: #{_lambda_.1} parent=1 // pred_region
      _
    $region9: #{_lambda_.1} parent=1 // pred_fallthru
      _
    // Predicated region
    $region10: #{_lambda_.1} parent=1 // pred_check
      _
    $region11: #{_lambda_.1} parent=1 // pred_check_branch
      %14 = sbr.rel (0) target = $region13
    $region12: #{_lambda_.1} parent=1 // pred_region
      _
    $region13: #{_lambda_.1} parent=1 // pred_fallthru
      _
    %v16 = vld [vmem:[%s0] sm:$0xff]
    %v17 = vld [vmem:[%s0 + $0x8] sm:$0xff]
    %v18 = vld [vmem:[%s1] sm:$0xf]
    %v19 = vld [vmem:[%s1 + $0x4] sm:$0xf]
    %v20 = vld [vmem:[%s1 + $0x8] sm:$0xf]
    %v21 = vld [vmem:[%s1 + $0xc] sm:$0xf]
    %v22 = vld [vmem:[%s1 + $0x10] sm:$0xf]
    %v23 = vld [vmem:[%s1 + $0x14] sm:$0xf]
    %v24 = vld [vmem:[%s1 + $0x18] sm:$0xf]
    %v25 = vld [vmem:[%s1 + $0x1c] sm:$0xf]
    %v26 = vld [vmem:[%s1 + $0x20] sm:$0xf]
    %v27 = vld [vmem:[%s1 + $0x24] sm:$0xf]
    %v28 = vld [vmem:[%s1 + $0x28] sm:$0xf]
    %v29 = vld [vmem:[%s1 + $0x2c] sm:$0xf]
    %v30 = vld [vmem:[%s1 + $0x30] sm:$0xf]
    %v31 = vld [vmem:[%s1 + $0x34] sm:$0xf]
    %v32 = vld [vmem:[%s1 + $0x38] sm:$0xf]
    %v33 = vld [vmem:[%s1 + $0x3c] sm:$0xf]
    %v34 = vld [vmem:[%s1 + $0x40] sm:$0xf]
    %v35 = vld [vmem:[%s1 + $0x44] sm:$0xf]
    %v36 = vld [vmem:[%s1 + $0x48] sm:$0xf]
    %v37 = vld [vmem:[%s1 + $0x4c] sm:$0xf]
    %v38 = vld [vmem:[%s1 + $0x50] sm:$0xf]
    %v39 = vld [vmem:[%s1 + $0x54] sm:$0xf]
    %v40 = vld [vmem:[%s1 + $0x58] sm:$0xf]
    %v41 = vld [vmem:[%s1 + $0x5c] sm:$0xf]
    %v42 = vld [vmem:[%s1 + $0x60] sm:$0xf]
    %v43 = vld [vmem:[%s1 + $0x64] sm:$0xf]
    %v44 = vld [vmem:[%s1 + $0x68] sm:$0xf]
    %v45 = vld [vmem:[%s1 + $0x6c] sm:$0xf]
    %v46 = vld [vmem:[%s1 + $0x70] sm:$0xf]
    %v47 = vld [vmem:[%s1 + $0x74] sm:$0xf]
    %v48 = vld [vmem:[%s1 + $0x78] sm:$0xf]
    %v49 = vld [vmem:[%s1 + $0x7c] sm:$0xf]
    %v50 = vld [vmem:[%s1 + $0x80] sm:$0xf]
    %v51 = vld [vmem:[%s1 + $0x84] sm:$0xf]
    %v52 = vld [vmem:[%s1 + $0x88] sm:$0xf]
    %v53 = vld [vmem:[%s1 + $0x8c] sm:$0xf]
    %v54 = vld [vmem:[%s1 + $0x90] sm:$0xf]
    %v55 = vld [vmem:[%s1 + $0x94] sm:$0xf]
    %v56 = vld [vmem:[%s1 + $0x98] sm:$0xf]
    %v57 = vld [vmem:[%s1 + $0x9c] sm:$0xf]
    %v58 = vld [vmem:[%s1 + $0xa0] sm:$0xf]
    %v59 = vld [vmem:[%s1 + $0xa4] sm:$0xf]
    %v60 = vld [vmem:[%s1 + $0xa8] sm:$0xf]
    %v61 = vld [vmem:[%s1 + $0xac] sm:$0xf]
    %v62 = vld [vmem:[%s1 + $0xb0] sm:$0xf]
    %v63 = vld [vmem:[%s1 + $0xb4] sm:$0xf]
    %v64 = vld [vmem:[%s1 + $0xb8] sm:$0xf]
    %v65 = vld [vmem:[%s1 + $0xbc] sm:$0xf]
    %v66 = vld [vmem:[%s1 + $0xc0] sm:$0xf]
    %v67 = vld [vmem:[%s1 + $0xc4] sm:$0xf]
    %v68 = vld [vmem:[%s1 + $0xc8] sm:$0xf]
    %v69 = vld [vmem:[%s1 + $0xcc] sm:$0xf]
    %v70 = vld [vmem:[%s1 + $0xd0] sm:$0xf]
    %v71 = vld [vmem:[%s1 + $0xd4] sm:$0xf]
    %v72 = vld [vmem:[%s1 + $0xd8] sm:$0xf]
    %v73 = vld [vmem:[%s1 + $0xdc] sm:$0xf]
    %v74 = vld [vmem:[%s1 + $0xe0] sm:$0xf]
    %v75 = vld [vmem:[%s1 + $0xe4] sm:$0xf]
    %v76 = vld [vmem:[%s1 + $0xe8] sm:$0xf]
    %v77 = vld [vmem:[%s1 + $0xec] sm:$0xf]
    %v78 = vld [vmem:[%s1 + $0xf0] sm:$0xf]
    %v79 = vld [vmem:[%s1 + $0xf4] sm:$0xf]
    %v80 = vld [vmem:[%s1 + $0xf8] sm:$0xf]
    %v81 = vld [vmem:[%s1 + $0xfc] sm:$0xf]
    %v82 = vld [vmem:[%s2] sm:$0x1]
    %v84 = vlaneseq
    %v85 = vshrl.u32 %v84, 7
    %v86 = vsub.s32 0, %v85
    %v87 = vrot.slane %v82, %v86
    %v91 = vunpack.c.l.b16 %v16
    %v92 = vunpack.c.h.b16 %v16
    %v93 = vunpack.c.l.b16 %v17
    %v94 = vunpack.c.h.b16 %v17
    %v95 = vpack.c.b16 %v91, %v91
    %v96 = vpack.c.b16 %v92, %v92
    %v97 = vpack.c.b16 %v93, %v93
    %v98 = vpack.c.b16 %v94, %v94
    %v167 = vunpack.c.l.b16 %v18
    %v168 = vunpack.c.l.b16 %v19
    %v169 = vunpack.c.l.b16 %v20
    %v170 = vunpack.c.l.b16 %v21
    %v171 = vunpack.c.l.b16 %v22
    %v172 = vunpack.c.l.b16 %v23
    %v173 = vunpack.c.l.b16 %v24
    %v174 = vunpack.c.l.b16 %v25
    %v175 = vunpack.c.l.b16 %v26
    %v176 = vunpack.c.l.b16 %v27
    %v177 = vunpack.c.l.b16 %v28
    %v178 = vunpack.c.l.b16 %v29
    %v179 = vunpack.c.l.b16 %v30
    %v180 = vunpack.c.l.b16 %v31
    %v181 = vunpack.c.l.b16 %v32
    %v182 = vunpack.c.l.b16 %v33
    %v183 = vunpack.c.l.b16 %v34
    %v184 = vunpack.c.l.b16 %v35
    %v185 = vunpack.c.l.b16 %v36
    %v186 = vunpack.c.l.b16 %v37
    %v187 = vunpack.c.l.b16 %v38
    %v188 = vunpack.c.l.b16 %v39
    %v189 = vunpack.c.l.b16 %v40
    %v190 = vunpack.c.l.b16 %v41
    %v191 = vunpack.c.l.b16 %v42
    %v192 = vunpack.c.l.b16 %v43
    %v193 = vunpack.c.l.b16 %v44
    %v194 = vunpack.c.l.b16 %v45
    %v195 = vunpack.c.l.b16 %v46
    %v196 = vunpack.c.l.b16 %v47
    %v197 = vunpack.c.l.b16 %v48
    %v198 = vunpack.c.l.b16 %v49
    %v199 = vunpack.c.l.b16 %v50
    %v200 = vunpack.c.l.b16 %v51
    %v201 = vunpack.c.l.b16 %v52
    %v202 = vunpack.c.l.b16 %v53
    %v203 = vunpack.c.l.b16 %v54
    %v204 = vunpack.c.l.b16 %v55
    %v205 = vunpack.c.l.b16 %v56
    %v206 = vunpack.c.l.b16 %v57
    %v207 = vunpack.c.l.b16 %v58
    %v208 = vunpack.c.l.b16 %v59
    %v209 = vunpack.c.l.b16 %v60
    %v210 = vunpack.c.l.b16 %v61
    %v211 = vunpack.c.l.b16 %v62
    %v212 = vunpack.c.l.b16 %v63
    %v213 = vunpack.c.l.b16 %v64
    %v214 = vunpack.c.l.b16 %v65
    %v215 = vunpack.c.l.b16 %v66
    %v216 = vunpack.c.l.b16 %v67
    %v217 = vunpack.c.l.b16 %v68
    %v218 = vunpack.c.l.b16 %v69
    %v219 = vunpack.c.l.b16 %v70
    %v220 = vunpack.c.l.b16 %v71
    %v221 = vunpack.c.l.b16 %v72
    %v222 = vunpack.c.l.b16 %v73
    %v223 = vunpack.c.l.b16 %v74
    %v224 = vunpack.c.l.b16 %v75
    %v225 = vunpack.c.l.b16 %v76
    %v226 = vunpack.c.l.b16 %v77
    %v227 = vunpack.c.l.b16 %v78
    %v228 = vunpack.c.l.b16 %v79
    %v229 = vunpack.c.l.b16 %v80
    %v230 = vunpack.c.l.b16 %v81
    %v231 = vpack.c.b16 %v168, %v167
    %v232 = vpack.c.b16 %v170, %v169
    %v233 = vpack.c.b16 %v172, %v171
    %v234 = vpack.c.b16 %v174, %v173
    %v235 = vpack.c.b16 %v176, %v175
    %v236 = vpack.c.b16 %v178, %v177
    %v237 = vpack.c.b16 %v180, %v179
    %v238 = vpack.c.b16 %v182, %v181
    %v239 = vpack.c.b16 %v184, %v183
    %v240 = vpack.c.b16 %v186, %v185
    %v241 = vpack.c.b16 %v188, %v187
    %v242 = vpack.c.b16 %v190, %v189
    %v243 = vpack.c.b16 %v192, %v191
    %v244 = vpack.c.b16 %v194, %v193
    %v245 = vpack.c.b16 %v196, %v195
    %v246 = vpack.c.b16 %v198, %v197
    %v247 = vpack.c.b16 %v200, %v199
    %v248 = vpack.c.b16 %v202, %v201
    %v249 = vpack.c.b16 %v204, %v203
    %v250 = vpack.c.b16 %v206, %v205
    %v251 = vpack.c.b16 %v208, %v207
    %v252 = vpack.c.b16 %v210, %v209
    %v253 = vpack.c.b16 %v212, %v211
    %v254 = vpack.c.b16 %v214, %v213
    %v255 = vpack.c.b16 %v216, %v215
    %v256 = vpack.c.b16 %v218, %v217
    %v257 = vpack.c.b16 %v220, %v219
    %v258 = vpack.c.b16 %v222, %v221
    %v259 = vpack.c.b16 %v224, %v223
    %v260 = vpack.c.b16 %v226, %v225
    %v261 = vpack.c.b16 %v228, %v227
    %v262 = vpack.c.b16 %v230, %v229
    %295 = vmatprep.subr.bf16.mxu0 0
    %296 = vmatpush1.bf16.msra.mxu0 %v238
    %297 = vmatprep.subr.bf16.mxu0 0
    %298 = vmatpush1.bf16.msra.mxu0 %v237
    %299 = vmatprep.subr.bf16.mxu0 0
    %300 = vmatpush1.bf16.msra.mxu0 %v236
    %301 = vmatprep.subr.bf16.mxu0 0
    %302 = vmatpush1.bf16.msra.mxu0 %v235
    %303 = vmatprep.subr.bf16.mxu0 0
    %304 = vmatpush1.bf16.msra.mxu0 %v234
    %305 = vmatprep.subr.bf16.mxu0 0
    %306 = vmatpush1.bf16.msra.mxu0 %v233
    %307 = vmatprep.subr.bf16.mxu0 0
    %308 = vmatpush1.bf16.msra.mxu0 %v232
    %309 = vmatprep.subr.bf16.mxu0 0
    %310 = vmatpush1.bf16.msra.mxu0 %v231
    %311 = vmatprep.subr.bf16.mxu0 0
    %312 = vmatpush2.bf16.msra.mxu0 %v246
    %313 = vmatprep.subr.bf16.mxu0 0
    %314 = vmatpush2.bf16.msra.mxu0 %v245
    %315 = vmatprep.subr.bf16.mxu0 0
    %316 = vmatpush2.bf16.msra.mxu0 %v244
    %317 = vmatprep.subr.bf16.mxu0 0
    %318 = vmatpush2.bf16.msra.mxu0 %v243
    %319 = vmatprep.subr.bf16.mxu0 0
    %320 = vmatpush2.bf16.msra.mxu0 %v242
    %321 = vmatprep.subr.bf16.mxu0 0
    %322 = vmatpush2.bf16.msra.mxu0 %v241
    %323 = vmatprep.subr.bf16.mxu0 0
    %324 = vmatpush2.bf16.msra.mxu0 %v240
    %325 = vmatprep.subr.bf16.mxu0 0
    %326 = vmatpush2.bf16.msra.mxu0 %v239
    %327 = vmatprep.mubr.bf16.mxu0 %v96
    %328 = vmatmul.mubr.bf16.gmra.mxu0 %v95
    %v329 = vpop.f32.mrf.mxu0
    %v330 = vadd.f32 %v87, %v329
    %v331 = vpop.f32.mrf.mxu0
    %v332 = vpop.f32.mrf.mxu0
    %v333 = vpop.f32.mrf.mxu0
    %334 = vdwg.mxu0
    %335 = vmatprep.subr.bf16.mxu0 0
    %336 = vmatpush1.bf16.msra.mxu0 %v254
    %337 = vmatprep.subr.bf16.mxu0 0
    %338 = vmatpush1.bf16.msra.mxu0 %v253
    %339 = vmatprep.subr.bf16.mxu0 0
    %340 = vmatpush1.bf16.msra.mxu0 %v252
    %341 = vmatprep.subr.bf16.mxu0 0
    %342 = vmatpush1.bf16.msra.mxu0 %v251
    %343 = vmatprep.subr.bf16.mxu0 0
    %344 = vmatpush1.bf16.msra.mxu0 %v250
    %345 = vmatprep.subr.bf16.mxu0 0
    %346 = vmatpush1.bf16.msra.mxu0 %v249
    %347 = vmatprep.subr.bf16.mxu0 0
    %348 = vmatpush1.bf16.msra.mxu0 %v248
    %349 = vmatprep.subr.bf16.mxu0 0
    %350 = vmatpush1.bf16.msra.mxu0 %v247
    %351 = vmatprep.subr.bf16.mxu0 0
    %352 = vmatpush2.bf16.msra.mxu0 %v262
    %353 = vmatprep.subr.bf16.mxu0 0
    %354 = vmatpush2.bf16.msra.mxu0 %v261
    %355 = vmatprep.subr.bf16.mxu0 0
    %356 = vmatpush2.bf16.msra.mxu0 %v260
    %357 = vmatprep.subr.bf16.mxu0 0
    %358 = vmatpush2.bf16.msra.mxu0 %v259
    %359 = vmatprep.subr.bf16.mxu0 0
    %360 = vmatpush2.bf16.msra.mxu0 %v258
    %361 = vmatprep.subr.bf16.mxu0 0
    %362 = vmatpush2.bf16.msra.mxu0 %v257
    %363 = vmatprep.subr.bf16.mxu0 0
    %364 = vmatpush2.bf16.msra.mxu0 %v256
    %365 = vmatprep.subr.bf16.mxu0 0
    %366 = vmatpush2.bf16.msra.mxu0 %v255
    %367 = vmatprep.mubr.bf16.mxu0 %v98
    %368 = vmatmul.mubr.bf16.gmra.mxu0 %v97
    %v369 = vpop.f32.mrf.mxu0
    %v370 = vadd.f32 %v330, %v369
    %v371 = vpop.f32.mrf.mxu0
    %v372 = vpop.f32.mrf.mxu0
    %v373 = vpop.f32.mrf.mxu0
    %374 = vdwg.mxu0
    %v375 = vpack.c.bf16 %v370, %v370
    %376 = vst [vmem:[#allocation2] sm:$0xf] %v375
    // Predicated region
    $region14: #{_lambda_.1} parent=1 // pred_check
      _
    $region15: #{_lambda_.1} parent=1 // pred_check_branch
      %378 = sbr.rel (0) target = $region17
    $region16: #{_lambda_.1} parent=1 // pred_region
      %s380 = ssub.s32 64, 64
      %381 = vsyncadd [#allocation3], %s380
      %s383 = sshll.u32 [#allocation2], 4
      %s384 = int_to_ptr.vmem [resolvable:$true] %s383
      %386 = dma.vmem_to_hbm [thread:$0]  %s384, 64, %s3, [#allocation3]
    $region17: #{_lambda_.1} parent=1 // pred_fallthru
      _
    // Predicated region
    $region18: #{_lambda_.1} parent=1 // pred_check
      _
    $region19: #{_lambda_.1} parent=1 // pred_check_branch
      %388 = sbr.rel (0) target = $region21
    $region20: #{_lambda_.1} parent=1 // pred_region
      %389 = dma.done [#allocation3], 64
    $region21: #{_lambda_.1} parent=1 // pred_fallthru
      _
    %390 = vsyncpa [#allocation3], 1

</llo_original>
